<compile_context>
chip_gen: v7x
topology: tpu7x:2x2x1
jax: 0.10.0
libtpu: 0.0.40
codegen_flags: <defaults>
</compile_context>

<pallas_src>
import functools

import jax
import jax.numpy as jnp
from jax.experimental import pallas as pl
from jax.experimental.pallas import tpu as pltpu


def _round_up(v: int, m: int) -> int:
    return (v + m - 1) // m * m


def _choose_tile(n: int, batch_tile: int) -> int:
    """Pick the batch tile (rows per grid step)."""
    batch_tile = max(8, _round_up(batch_tile, 8))
    if n > batch_tile:
        return batch_tile                      # large N: stream big tiles (grid >= 2)
    if n >= 1024:
        # Medium N: force >= 2 grid steps so both v7x TensorCores get work.
        return _round_up(-(-n // 2), 8)
    # Small N: one block covering the whole batch (block dim == array dim is legal).
    return n


def _sequential_mlp_kernel(x_ref, w1_ref, b1_ref, w2_ref, b2_ref, w3_ref, b3_ref, o_ref):
    """Fused Linear->ReLU->Linear->ReLU->Linear->Tanh on one unpadded batch tile.

    x_ref : (tile, d_in)   activation tile (native dtype)
    w*_ref: (in, out)      unpadded weights in the MXU dtype (bf16 by default)
    b*_ref: (1, out)       f32 bias rows
    o_ref : (tile, d_out)  output tile
    """
    mxu_dt = w1_ref.dtype  # MXU operand dtype; accumulation is f32 via preferred_element_type.

    h = x_ref[...].astype(mxu_dt)

    # Layer 1: Linear + ReLU (f32 accumulate + f32 elementwise)
    h = jnp.dot(h, w1_ref[...], preferred_element_type=jnp.float32) + b1_ref[...]
    h = jnp.maximum(h, 0.0)

    # Layer 2: Linear + ReLU
    h = jnp.dot(h.astype(mxu_dt), w2_ref[...], preferred_element_type=jnp.float32) + b2_ref[...]
    h = jnp.maximum(h, 0.0)

    # Layer 3: Linear + Tanh (only d_out lanes are ever computed / stored)
    h = jnp.dot(h.astype(mxu_dt), w3_ref[...], preferred_element_type=jnp.float32) + b3_ref[...]
    o_ref[...] = jnp.tanh(h).astype(o_ref.dtype)


@functools.partial(jax.jit, static_argnames=("batch_tile", "mxu_dtype"))
def sequential_forward(x, w1, b1, w2, b2, w3, b3, *, batch_tile=2048, mxu_dtype=jnp.bfloat16):
    """Runs the fused Sequential forward pass via pallas_call.

    Args:
      x:  (N, D_in) input activations.
      w*: (in, out) weight matrices (already transposed from PyTorch layout).
      b*: (out,) or (1, out) bias rows.
      batch_tile: max rows per grid step (rounded to a multiple of 8).
      mxu_dtype: dtype fed to the MXU (bf16 recommended on v5e/v6e/v7x);
                 None keeps the native input dtype (exact path).
    Returns:
      (N, D_out) output of the module chain.
    """
    n, d_in = x.shape
    h1 = w1.shape[1]
    h2 = w2.shape[1]
    d_out = w3.shape[1]

    mxu_dt = jnp.dtype(x.dtype) if mxu_dtype is None else jnp.dtype(mxu_dtype)

    # MXU operands in mxu_dt; bias rows in f32 (elementwise math stays f32).
    w1c = w1.astype(mxu_dt)
    w2c = w2.astype(mxu_dt)
    w3c = w3.astype(mxu_dt)
    b1r = b1.reshape(1, h1).astype(jnp.float32)
    b2r = b2.reshape(1, h2).astype(jnp.float32)
    b3r = b3.reshape(1, d_out).astype(jnp.float32)

    tile = _choose_tile(n, batch_tile)
    grid = (pl.cdiv(n, tile),)

    act_bytes = x.dtype.itemsize
    cost = pl.CostEstimate(
        flops=2 * n * (d_in * h1 + h1 * h2 + h2 * d_out),
        transcendentals=n * d_out,  # tanh
        bytes_accessed=(
            n * d_in * act_bytes                                   # x read
            + n * d_out * act_bytes                                # out write
            + (d_in * h1 + h1 * h2 + h2 * d_out) * mxu_dt.itemsize  # weights
            + (h1 + h2 + d_out) * 4                                # biases (f32)
        ),
    )

    return pl.pallas_call(
        _sequential_mlp_kernel,
        out_shape=jax.ShapeDtypeStruct((n, d_out), x.dtype),
        grid=grid,
        in_specs=[
            # x streams over the batch axis, unpadded (last dim == full array dim).
            pl.BlockSpec((tile, d_in), lambda i: (i, 0)),
            # Weights / biases: constant block index -> stay resident in VMEM
            # across grid steps (no per-step re-fetch).
            pl.BlockSpec((d_in, h1), lambda i: (0, 0)),
            pl.BlockSpec((1, h1), lambda i: (0, 0)),
            pl.BlockSpec((h1, h2), lambda i: (0, 0)),
            pl.BlockSpec((1, h2), lambda i: (0, 0)),
            pl.BlockSpec((h2, d_out), lambda i: (0, 0)),
            pl.BlockSpec((1, d_out), lambda i: (0, 0)),
        ],
        out_specs=pl.BlockSpec((tile, d_out), lambda i: (i, 0)),
        compiler_params=pltpu.CompilerParams(
            dimension_semantics=("parallel",),  # batch axis shards across TCs (v7x megacore)
        ),
        cost_estimate=cost,
    )(x, w1c, b1r, w2c, b2r, w3c, b3r)


def _init_linear(key, fan_in, fan_out, dtype=jnp.float32):
    """Deterministic PyTorch-style uniform(-1/sqrt(fan_in), 1/sqrt(fan_in)) init.

    Returns weight already transposed to (fan_in, fan_out) and bias as (fan_out,).
    """
    kw, kb = jax.random.split(key)
    bound = 1.0 / jnp.sqrt(jnp.asarray(fan_in, dtype))
    # PyTorch weight is (out, in); sample in that layout then transpose.
    w_torch = jax.random.uniform(kw, (fan_out, fan_in), dtype, -bound, bound)
    b = jax.random.uniform(kb, (fan_out,), dtype, -bound, bound)
    return jnp.transpose(w_torch), b


def _reference_forward(x, w1, b1, w2, b2, w3, b3, mxu_dtype=None):
    """Plain-JAX reference mirroring Sequential.forward, at matching MXU precision."""
    dt = jnp.dtype(x.dtype) if mxu_dtype is None else jnp.dtype(mxu_dtype)
    h = jnp.dot(x.astype(dt), w1.astype(dt), preferred_element_type=jnp.float32) + b1
    h = jnp.maximum(h, 0.0)
    h = jnp.dot(h.astype(dt), w2.astype(dt), preferred_element_type=jnp.float32) + b2
    h = jnp.maximum(h, 0.0)
    h = jnp.dot(h.astype(dt), w3.astype(dt), preferred_element_type=jnp.float32) + b3
    return jnp.tanh(h)


# TODO(synk): Sequential.backward / param / zero_grad are training-side bookkeeping
# with no forward-pass Pallas equivalent; only forward() is implemented here.

if __name__ == "__main__":
    # Small deterministic shapes: batch=16, in=32, hidden=64, out=32.
    N, D_IN, H, D_OUT = 16, 32, 64, 32

    root = jax.random.PRNGKey(0)
    k_x, k1, k2, k3, k_x2 = jax.random.split(root, 5)

    x = jax.random.normal(k_x, (N, D_IN), jnp.float32)
    w1, b1 = _init_linear(k1, D_IN, H)
    w2, b2 = _init_linear(k2, H, H)
    w3, b3 = _init_linear(k3, H, D_OUT)

    # 1) Exact f32 path (mxu_dtype=None), single full-array batch block.
    out = sequential_forward(x, w1, b1, w2, b2, w3, b3, mxu_dtype=None)
    out = jax.block_until_ready(out)
    ref = _reference_forward(x, w1, b1, w2, b2, w3, b3, mxu_dtype=None)
    assert out.shape == (N, D_OUT)
    assert jnp.allclose(out, ref, atol=1e-5, rtol=1e-5), "f32 Pallas output mismatch vs reference"

    # 2) Default bf16-MXU path with a multi-step grid and a ragged edge block
    #    (N not a multiple of the tile -> exercises Pallas edge masking).
    N2 = 1000
    x2 = jax.random.normal(k_x2, (N2, D_IN), jnp.float32)
    out2 = sequential_forward(x2, w1, b1, w2, b2, w3, b3, batch_tile=256)
    out2 = jax.block_until_ready(out2)
    ref2 = _reference_forward(x2, w1, b1, w2, b2, w3, b3, mxu_dtype=jnp.bfloat16)
    assert out2.shape == (N2, D_OUT)
    assert jnp.allclose(out2, ref2, atol=5e-3, rtol=5e-3), "bf16 Pallas output mismatch vs reference"

    print("KERNEL_OK")
</pallas_src>

<mosaic_0001>
module attributes {stable_mosaic.version = 11 : i64} {
  func.func @_sequential_mlp_kernel(%arg0: i32, %arg1: memref<16x32xf32, #tpu.memory_space<vmem>>, %arg2: memref<32x64xf32, #tpu.memory_space<vmem>>, %arg3: memref<1x64xf32, #tpu.memory_space<vmem>>, %arg4: memref<64x64xf32, #tpu.memory_space<vmem>>, %arg5: memref<1x64xf32, #tpu.memory_space<vmem>>, %arg6: memref<64x32xf32, #tpu.memory_space<vmem>>, %arg7: memref<1x32xf32, #tpu.memory_space<vmem>>, %arg8: memref<16x32xf32, #tpu.memory_space<vmem>>) attributes {dimension_semantics = [#tpu.dimension_semantics<parallel>], iteration_bounds = array<i64: 1>, scalar_prefetch = 0 : i64, scratch_operands = 0 : i64, tpu.core_type = #tpu.core_type<tc>, window_params = [{transform_indices = @transform_0, window_bounds = array<i64: 16, 32>}, {pipeline_mode = #tpu.pipeline_mode<synchronous>, transform_indices = @transform_1, window_bounds = array<i64: 32, 64>}, {pipeline_mode = #tpu.pipeline_mode<synchronous>, transform_indices = @transform_2, window_bounds = array<i64: 1, 64>}, {pipeline_mode = #tpu.pipeline_mode<synchronous>, transform_indices = @transform_3, window_bounds = array<i64: 64, 64>}, {pipeline_mode = #tpu.pipeline_mode<synchronous>, transform_indices = @transform_4, window_bounds = array<i64: 1, 64>}, {pipeline_mode = #tpu.pipeline_mode<synchronous>, transform_indices = @transform_5, window_bounds = array<i64: 64, 32>}, {pipeline_mode = #tpu.pipeline_mode<synchronous>, transform_indices = @transform_6, window_bounds = array<i64: 1, 32>}, {transform_indices = @transform_7, window_bounds = array<i64: 16, 32>}]} {
    %c0 = arith.constant 0 : index
    %c0_0 = arith.constant 0 : index
    %0 = vector.load %arg1[%c0, %c0_0] : memref<16x32xf32, #tpu.memory_space<vmem>>, vector<16x32xf32>
    %c0_1 = arith.constant 0 : index
    %c0_2 = arith.constant 0 : index
    %1 = vector.load %arg2[%c0_1, %c0_2] : memref<32x64xf32, #tpu.memory_space<vmem>>, vector<32x64xf32>
    %cst = arith.constant dense<0.000000e+00> : vector<16x64xf32>
    %2 = tpu.matmul %0, %1, %cst {dimension_numbers = #tpu.dot_dimension_numbers<[1], [0], [0], [1], [0, 0, 1, 1], [], []>} : vector<16x32xf32>, vector<32x64xf32>, vector<16x64xf32> -> vector<16x64xf32>
    %c0_3 = arith.constant 0 : index
    %c0_4 = arith.constant 0 : index
    %3 = vector.load %arg3[%c0_3, %c0_4] : memref<1x64xf32, #tpu.memory_space<vmem>>, vector<1x64xf32>
    %4 = vector.broadcast %3 : vector<1x64xf32> to vector<16x64xf32>
    %5 = arith.addf %2, %4 : vector<16x64xf32>
    %cst_5 = arith.constant 0.000000e+00 : f32
    %6 = vector.broadcast %cst_5 : f32 to vector<16x64xf32>
    %7 = arith.maximumf %5, %6 : vector<16x64xf32>
    %c0_6 = arith.constant 0 : index
    %c0_7 = arith.constant 0 : index
    %8 = vector.load %arg4[%c0_6, %c0_7] : memref<64x64xf32, #tpu.memory_space<vmem>>, vector<64x64xf32>
    %cst_8 = arith.constant dense<0.000000e+00> : vector<16x64xf32>
    %9 = tpu.matmul %7, %8, %cst_8 {dimension_numbers = #tpu.dot_dimension_numbers<[1], [0], [0], [1], [0, 0, 1, 1], [], []>} : vector<16x64xf32>, vector<64x64xf32>, vector<16x64xf32> -> vector<16x64xf32>
    %c0_9 = arith.constant 0 : index
    %c0_10 = arith.constant 0 : index
    %10 = vector.load %arg5[%c0_9, %c0_10] : memref<1x64xf32, #tpu.memory_space<vmem>>, vector<1x64xf32>
    %11 = vector.broadcast %10 : vector<1x64xf32> to vector<16x64xf32>
    %12 = arith.addf %9, %11 : vector<16x64xf32>
    %cst_11 = arith.constant 0.000000e+00 : f32
    %13 = vector.broadcast %cst_11 : f32 to vector<16x64xf32>
    %14 = arith.maximumf %12, %13 : vector<16x64xf32>
    %c0_12 = arith.constant 0 : index
    %c0_13 = arith.constant 0 : index
    %15 = vector.load %arg6[%c0_12, %c0_13] : memref<64x32xf32, #tpu.memory_space<vmem>>, vector<64x32xf32>
    %cst_14 = arith.constant dense<0.000000e+00> : vector<16x32xf32>
    %16 = tpu.matmul %14, %15, %cst_14 {dimension_numbers = #tpu.dot_dimension_numbers<[1], [0], [0], [1], [0, 0, 1, 1], [], []>} : vector<16x64xf32>, vector<64x32xf32>, vector<16x32xf32> -> vector<16x32xf32>
    %c0_15 = arith.constant 0 : index
    %c0_16 = arith.constant 0 : index
    %17 = vector.load %arg7[%c0_15, %c0_16] : memref<1x32xf32, #tpu.memory_space<vmem>>, vector<1x32xf32>
    %18 = vector.broadcast %17 : vector<1x32xf32> to vector<16x32xf32>
    %19 = arith.addf %16, %18 : vector<16x32xf32>
    %20 = math.tanh %19 : vector<16x32xf32>
    %c0_17 = arith.constant 0 : index
    %c0_18 = arith.constant 0 : index
    %21 = vector.load %arg8[%c0_17, %c0_18] : memref<16x32xf32, #tpu.memory_space<vmem>>, vector<16x32xf32>
    tpu.vector_store %arg8[%c0_17, %c0_18], %20 {strides = array<i32>} : memref<16x32xf32, #tpu.memory_space<vmem>>, vector<16x32xf32>,
    return
  }
  func.func @transform_0(%arg0: i32) -> (i32, i32) {
    %c0_i32 = arith.constant 0 : i32
    %c0_i32_0 = arith.constant 0 : i32
    return %arg0, %c0_i32 : i32, i32
  }
  func.func @transform_1(%arg0: i32) -> (i32, i32) {
    %c0_i32 = arith.constant 0 : i32
    %c0_i32_0 = arith.constant 0 : i32
    %c0_i32_1 = arith.constant 0 : i32
    return %c0_i32, %c0_i32_0 : i32, i32
  }
  func.func @transform_2(%arg0: i32) -> (i32, i32) {
    %c0_i32 = arith.constant 0 : i32
    %c0_i32_0 = arith.constant 0 : i32
    %c0_i32_1 = arith.constant 0 : i32
    return %c0_i32, %c0_i32_0 : i32, i32
  }
  func.func @transform_3(%arg0: i32) -> (i32, i32) {
    %c0_i32 = arith.constant 0 : i32
    %c0_i32_0 = arith.constant 0 : i32
    %c0_i32_1 = arith.constant 0 : i32
    return %c0_i32, %c0_i32_0 : i32, i32
  }
  func.func @transform_4(%arg0: i32) -> (i32, i32) {
    %c0_i32 = arith.constant 0 : i32
    %c0_i32_0 = arith.constant 0 : i32
    %c0_i32_1 = arith.constant 0 : i32
    return %c0_i32, %c0_i32_0 : i32, i32
  }
  func.func @transform_5(%arg0: i32) -> (i32, i32) {
    %c0_i32 = arith.constant 0 : i32
    %c0_i32_0 = arith.constant 0 : i32
    %c0_i32_1 = arith.constant 0 : i32
    return %c0_i32, %c0_i32_0 : i32, i32
  }
  func.func @transform_6(%arg0: i32) -> (i32, i32) {
    %c0_i32 = arith.constant 0 : i32
    %c0_i32_0 = arith.constant 0 : i32
    %c0_i32_1 = arith.constant 0 : i32
    return %c0_i32, %c0_i32_0 : i32, i32
  }
  func.func @transform_7(%arg0: i32) -> (i32, i32) {
    %c0_i32 = arith.constant 0 : i32
    %c0_i32_0 = arith.constant 0 : i32
    return %arg0, %c0_i32 : i32, i32
  }
}

</mosaic_0001>

<llo_original>
// kernel: sequential_forward.1
$region0: #{sequential_forward.1}
  #allocation0 [shape = 'u32[]', space=smem, size = 0x4, offset = 0x4, fixed_abs, tag = 'smem constant byte address 0x4 - core index']
  #allocation1 [shape = 'u32[144,128]{1,0:T(1,128)}', space=vmem, size = 0x12000, scoped, tag = 'internal scratch']
  %s0 = inlined_call_operand.vmem [shape: f32[16,32], index: 0, kind: input, shape index: {}]
  %s1 = inlined_call_operand.vmem [shape: f32[32,64], index: 1, kind: input, shape index: {}]
  %s2 = inlined_call_operand.vmem [shape: f32[1,64], index: 2, kind: input, shape index: {}]
  %s3 = inlined_call_operand.vmem [shape: f32[64,64], index: 3, kind: input, shape index: {}]
  %s4 = inlined_call_operand.vmem [shape: f32[1,64], index: 4, kind: input, shape index: {}]
  %s5 = inlined_call_operand.vmem [shape: f32[64,32], index: 5, kind: input, shape index: {}]
  %s6 = inlined_call_operand.vmem [shape: f32[1,32], index: 6, kind: input, shape index: {}]
  %s7 = inlined_call_operand.hbm [shape: f32[16,32], index: 7, kind: output, shape index: {}]
  %s8 = sld [smem:[#allocation0]]
  $region38: #{sequential_forward.1} parent=0
    _
  %s10 = ssub.s32 1, %s8
  %s11 = scalar_select 0, %s10, %s8
  $region1: #{sequential_forward.1} parent=0
    #allocation2 [shape = 'u8[8192]{0}', space=vmem, size = 0x2000, scoped, tag = 'output window, operand 0, single buffered']
    #allocation3 [shape = 's32[1]{0}', space=sflag, size = 0x4, scoped, tag = 'scoped memory for sequential_forward.1']
    %12 = vsyncpa [#allocation3], 0
    // Predicated region
    $region2: #{sequential_forward.1} parent=1 // pred_check
      _
    $region3: #{sequential_forward.1} parent=1 // pred_check_branch
      %14 = sbr.rel (0) target = $region5
    $region4: #{sequential_forward.1} parent=1 // pred_region
      _
    $region5: #{sequential_forward.1} parent=1 // pred_fallthru
      _
    // Predicated region
    $region6: #{sequential_forward.1} parent=1 // pred_check
      _
    $region7: #{sequential_forward.1} parent=1 // pred_check_branch
      %16 = sbr.rel (0) target = $region9
    $region8: #{sequential_forward.1} parent=1 // pred_region
      _
    $region9: #{sequential_forward.1} parent=1 // pred_fallthru
      _
    // Predicated region
    $region10: #{sequential_forward.1} parent=1 // pred_check
      _
    $region11: #{sequential_forward.1} parent=1 // pred_check_branch
      %18 = sbr.rel (0) target = $region13
    $region12: #{sequential_forward.1} parent=1 // pred_region
      _
    $region13: #{sequential_forward.1} parent=1 // pred_fallthru
      _
    // Predicated region
    $region14: #{sequential_forward.1} parent=1 // pred_check
      _
    $region15: #{sequential_forward.1} parent=1 // pred_check_branch
      %20 = sbr.rel (0) target = $region17
    $region16: #{sequential_forward.1} parent=1 // pred_region
      _
    $region17: #{sequential_forward.1} parent=1 // pred_fallthru
      _
    // Predicated region
    $region18: #{sequential_forward.1} parent=1 // pred_check
      _
    $region19: #{sequential_forward.1} parent=1 // pred_check_branch
      %22 = sbr.rel (0) target = $region21
    $region20: #{sequential_forward.1} parent=1 // pred_region
      _
    $region21: #{sequential_forward.1} parent=1 // pred_fallthru
      _
    // Predicated region
    $region22: #{sequential_forward.1} parent=1 // pred_check
      _
    $region23: #{sequential_forward.1} parent=1 // pred_check_branch
      %24 = sbr.rel (0) target = $region25
    $region24: #{sequential_forward.1} parent=1 // pred_region
      _
    $region25: #{sequential_forward.1} parent=1 // pred_fallthru
      _
    // Predicated region
    $region26: #{sequential_forward.1} parent=1 // pred_check
      _
    $region27: #{sequential_forward.1} parent=1 // pred_check_branch
      %26 = sbr.rel (0) target = $region29
    $region28: #{sequential_forward.1} parent=1 // pred_region
      _
    $region29: #{sequential_forward.1} parent=1 // pred_fallthru
      _
    %v27 = vld [vmem:[%s0] sm:$0xff]
    %v28 = vld [vmem:[%s0 + $0x8] sm:$0xff]
    %v29 = vld [vmem:[%s1] sm:$0xff]
    %v30 = vld [vmem:[%s1 + $0x8] sm:$0xff]
    %v31 = vld [vmem:[%s1 + $0x10] sm:$0xff]
    %v32 = vld [vmem:[%s1 + $0x18] sm:$0xff]
    %v33 = vld [vmem:[%s2] sm:$0x1]
    %v35 = vlaneseq
    %v36 = vshrl.u32 %v35, 7
    %v37 = vsub.s32 0, %v36
    %v38 = vrot.slane %v33, %v37
    %vm40 = vcmask 261120
    %v42 = vsel %vm40, %v27, 0
    %v45 = vsel %vm40, %v28, 0
    %47 = vmatprep.subr.mxu0 0.0
    %48 = vmatpush1.msra.mxu0 %v29
    %49 = vmatprep.subr.mxu0 0.0
    %50 = vmatpush1.msra.mxu0 %v30
    %51 = vmatprep.subr.mxu0 0.0
    %52 = vmatpush1.msra.mxu0 %v31
    %53 = vmatprep.subr.mxu0 0.0
    %54 = vmatpush1.msra.mxu0 %v32
    %55 = vmatprep.subr.mxu0 0.0
    %56 = vmatpush1.msra.mxu0 0.0
    %57 = vmatprep.subr.mxu0 0.0
    %58 = vmatpush1.msra.mxu0 0.0
    %59 = vmatprep.subr.mxu0 0.0
    %60 = vmatpush1.msra.mxu0 0.0
    %61 = vmatprep.subr.mxu0 0.0
    %62 = vmatpush1.msra.mxu0 0.0
    %63 = vmatprep.subr.mxu0 0.0
    %64 = vmatpush1.msra.mxu0 0.0
    %65 = vmatprep.subr.mxu0 0.0
    %66 = vmatpush1.msra.mxu0 0.0
    %67 = vmatprep.subr.mxu0 0.0
    %68 = vmatpush1.msra.mxu0 0.0
    %69 = vmatprep.subr.mxu0 0.0
    %70 = vmatpush1.msra.mxu0 0.0
    %71 = vmatprep.subr.mxu0 0.0
    %72 = vmatpush1.msra.mxu0 0.0
    %73 = vmatprep.subr.mxu0 0.0
    %74 = vmatpush1.msra.mxu0 0.0
    %75 = vmatprep.subr.mxu0 0.0
    %76 = vmatpush1.msra.mxu0 0.0
    %77 = vmatprep.subr.mxu0 0.0
    %78 = vmatpush1.msra.mxu0 0.0
    %79 = vmatprep.subr.mxu0 0.0
    %80 = vmatpush1.msra.mxu0 0.0
    %81 = vmatprep.subr.mxu0 0.0
    %82 = vmatpush1.msra.mxu0 0.0
    %83 = vmatprep.subr.mxu0 0.0
    %84 = vmatpush1.msra.mxu0 0.0
    %85 = vmatprep.subr.mxu0 0.0
    %86 = vmatpush1.msra.mxu0 0.0
    %87 = vmatprep.subr.mxu0 0.0
    %88 = vmatpush1.msra.mxu0 0.0
    %89 = vmatprep.subr.mxu0 0.0
    %90 = vmatpush1.msra.mxu0 0.0
    %91 = vmatprep.subr.mxu0 0.0
    %92 = vmatpush1.msra.mxu0 0.0
    %93 = vmatprep.subr.mxu0 0.0
    %94 = vmatpush1.msra.mxu0 0.0
    %95 = vmatprep.subr.mxu0 0.0
    %96 = vmatpush1.msra.mxu0 0.0
    %97 = vmatprep.subr.mxu0 0.0
    %98 = vmatpush1.msra.mxu0 0.0
    %99 = vmatprep.subr.mxu0 0.0
    %100 = vmatpush1.msra.mxu0 0.0
    %101 = vmatprep.subr.mxu0 0.0
    %102 = vmatpush1.msra.mxu0 0.0
    %103 = vmatprep.subr.mxu0 0.0
    %104 = vmatpush1.msra.mxu0 0.0
    %105 = vmatprep.subr.mxu0 0.0
    %106 = vmatpush1.msra.mxu0 0.0
    %107 = vmatprep.subr.mxu0 0.0
    %108 = vmatpush1.msra.mxu0 0.0
    %109 = vmatprep.subr.mxu0 0.0
    %110 = vmatpush1.msra.mxu0 0.0
    %111 = vmatprep.mubr.f32.mxu0 0.0
    %112 = vmatmul.mubr.f32.gmra.mrb[0].mxu0 %v42
    %v113 = vpop.f32.mrb[0].mxu0
    %v114 = vadd.f32 %v38, %v113
    %v115 = vpop.f32.mrb[0].mxu0
    %116 = vmatprep.mubr.f32.mxu0 0.0
    %117 = vmatmul.mubr.f32.gmra.mrb[0].mxu0 %v45
    %v118 = vpop.f32.mrb[0].mxu0
    %v119 = vadd.f32 %v38, %v118
    %v120 = vpop.f32.mrb[0].mxu0
    %121 = vdwg.mxu0
    %v122 = vmax.f32 %v114, 0.0
    %v123 = vmax.f32 %v119, 0.0
    %v124 = vld [vmem:[%s3] sm:$0xff]
    %v125 = vld [vmem:[%s3 + $0x8] sm:$0xff]
    %v126 = vld [vmem:[%s3 + $0x10] sm:$0xff]
    %v127 = vld [vmem:[%s3 + $0x18] sm:$0xff]
    %v128 = vld [vmem:[%s3 + $0x20] sm:$0xff]
    %v129 = vld [vmem:[%s3 + $0x28] sm:$0xff]
    %v130 = vld [vmem:[%s3 + $0x30] sm:$0xff]
    %v131 = vld [vmem:[%s3 + $0x38] sm:$0xff]
    %v132 = vld [vmem:[%s4] sm:$0x1]
    %v134 = vlaneseq
    %v135 = vshrl.u32 %v134, 7
    %v136 = vsub.s32 0, %v135
    %v137 = vrot.slane %v132, %v136
    %vm139 = vcmask 523264
    %v141 = vsel %vm139, %v122, 0
    %v144 = vsel %vm139, %v123, 0
    %146 = vmatprep.subr.mxu0 0.0
    %147 = vmatpush1.msra.mxu0 %v124
    %148 = vmatprep.subr.mxu0 0.0
    %149 = vmatpush1.msra.mxu0 %v125
    %150 = vmatprep.subr.mxu0 0.0
    %151 = vmatpush1.msra.mxu0 %v126
    %152 = vmatprep.subr.mxu0 0.0
    %153 = vmatpush1.msra.mxu0 %v127
    %154 = vmatprep.subr.mxu0 0.0
    %155 = vmatpush1.msra.mxu0 %v128
    %156 = vmatprep.subr.mxu0 0.0
    %157 = vmatpush1.msra.mxu0 %v129
    %158 = vmatprep.subr.mxu0 0.0
    %159 = vmatpush1.msra.mxu0 %v130
    %160 = vmatprep.subr.mxu0 0.0
    %161 = vmatpush1.msra.mxu0 %v131
    %162 = vmatprep.subr.mxu0 0.0
    %163 = vmatpush1.msra.mxu0 0.0
    %164 = vmatprep.subr.mxu0 0.0
    %165 = vmatpush1.msra.mxu0 0.0
    %166 = vmatprep.subr.mxu0 0.0
    %167 = vmatpush1.msra.mxu0 0.0
    %168 = vmatprep.subr.mxu0 0.0
    %169 = vmatpush1.msra.mxu0 0.0
    %170 = vmatprep.subr.mxu0 0.0
    %171 = vmatpush1.msra.mxu0 0.0
    %172 = vmatprep.subr.mxu0 0.0
    %173 = vmatpush1.msra.mxu0 0.0
    %174 = vmatprep.subr.mxu0 0.0
    %175 = vmatpush1.msra.mxu0 0.0
    %176 = vmatprep.subr.mxu0 0.0
    %177 = vmatpush1.msra.mxu0 0.0
    %178 = vmatprep.subr.mxu0 0.0
    %179 = vmatpush1.msra.mxu0 0.0
    %180 = vmatprep.subr.mxu0 0.0
    %181 = vmatpush1.msra.mxu0 0.0
    %182 = vmatprep.subr.mxu0 0.0
    %183 = vmatpush1.msra.mxu0 0.0
    %184 = vmatprep.subr.mxu0 0.0
    %185 = vmatpush1.msra.mxu0 0.0
    %186 = vmatprep.subr.mxu0 0.0
    %187 = vmatpush1.msra.mxu0 0.0
    %188 = vmatprep.subr.mxu0 0.0
    %189 = vmatpush1.msra.mxu0 0.0
    %190 = vmatprep.subr.mxu0 0.0
    %191 = vmatpush1.msra.mxu0 0.0
    %192 = vmatprep.subr.mxu0 0.0
    %193 = vmatpush1.msra.mxu0 0.0
    %194 = vmatprep.subr.mxu0 0.0
    %195 = vmatpush1.msra.mxu0 0.0
    %196 = vmatprep.subr.mxu0 0.0
    %197 = vmatpush1.msra.mxu0 0.0
    %198 = vmatprep.subr.mxu0 0.0
    %199 = vmatpush1.msra.mxu0 0.0
    %200 = vmatprep.subr.mxu0 0.0
    %201 = vmatpush1.msra.mxu0 0.0
    %202 = vmatprep.subr.mxu0 0.0
    %203 = vmatpush1.msra.mxu0 0.0
    %204 = vmatprep.subr.mxu0 0.0
    %205 = vmatpush1.msra.mxu0 0.0
    %206 = vmatprep.subr.mxu0 0.0
    %207 = vmatpush1.msra.mxu0 0.0
    %208 = vmatprep.subr.mxu0 0.0
    %209 = vmatpush1.msra.mxu0 0.0
    %210 = vmatprep.mubr.f32.mxu0 0.0
    %211 = vmatmul.mubr.f32.gmra.mrb[0].mxu0 %v141
    %v212 = vpop.f32.mrb[0].mxu0
    %v213 = vadd.f32 %v137, %v212
    %v214 = vpop.f32.mrb[0].mxu0
    %215 = vmatprep.mubr.f32.mxu0 0.0
    %216 = vmatmul.mubr.f32.gmra.mrb[0].mxu0 %v144
    %v217 = vpop.f32.mrb[0].mxu0
    %v218 = vadd.f32 %v137, %v217
    %v219 = vpop.f32.mrb[0].mxu0
    %220 = vdwg.mxu0
    %v221 = vmax.f32 %v213, 0.0
    %v222 = vmax.f32 %v218, 0.0
    %v223 = vld [vmem:[%s5] sm:$0xff]
    %v224 = vld [vmem:[%s5 + $0x8] sm:$0xff]
    %v225 = vld [vmem:[%s5 + $0x10] sm:$0xff]
    %v226 = vld [vmem:[%s5 + $0x18] sm:$0xff]
    %v227 = vld [vmem:[%s5 + $0x20] sm:$0xff]
    %v228 = vld [vmem:[%s5 + $0x28] sm:$0xff]
    %v229 = vld [vmem:[%s5 + $0x30] sm:$0xff]
    %v230 = vld [vmem:[%s5 + $0x38] sm:$0xff]
    %v231 = vld [vmem:[%s6] sm:$0x1]
    %v233 = vlaneseq
    %v234 = vshrl.u32 %v233, 7
    %v235 = vsub.s32 0, %v234
    %v236 = vrot.slane %v231, %v235
    %v239 = vsel %vm139, %v221, 0
    %v242 = vsel %vm139, %v222, 0
    %244 = vmatprep.subr.mxu0 0.0
    %245 = vmatpush1.msra.mxu0 %v223
    %246 = vmatprep.subr.mxu0 0.0
    %247 = vmatpush1.msra.mxu0 %v224
    %248 = vmatprep.subr.mxu0 0.0
    %249 = vmatpush1.msra.mxu0 %v225
    %250 = vmatprep.subr.mxu0 0.0
    %251 = vmatpush1.msra.mxu0 %v226
    %252 = vmatprep.subr.mxu0 0.0
    %253 = vmatpush1.msra.mxu0 %v227
    %254 = vmatprep.subr.mxu0 0.0
    %255 = vmatpush1.msra.mxu0 %v228
    %256 = vmatprep.subr.mxu0 0.0
    %257 = vmatpush1.msra.mxu0 %v229
    %258 = vmatprep.subr.mxu0 0.0
    %259 = vmatpush1.msra.mxu0 %v230
    %260 = vmatprep.subr.mxu0 0.0
    %261 = vmatpush1.msra.mxu0 0.0
    %262 = vmatprep.subr.mxu0 0.0
    %263 = vmatpush1.msra.mxu0 0.0
    %264 = vmatprep.subr.mxu0 0.0
    %265 = vmatpush1.msra.mxu0 0.0
    %266 = vmatprep.subr.mxu0 0.0
    %267 = vmatpush1.msra.mxu0 0.0
    %268 = vmatprep.subr.mxu0 0.0
    %269 = vmatpush1.msra.mxu0 0.0
    %270 = vmatprep.subr.mxu0 0.0
    %271 = vmatpush1.msra.mxu0 0.0
    %272 = vmatprep.subr.mxu0 0.0
    %273 = vmatpush1.msra.mxu0 0.0
    %274 = vmatprep.subr.mxu0 0.0
    %275 = vmatpush1.msra.mxu0 0.0
    %276 = vmatprep.subr.mxu0 0.0
    %277 = vmatpush1.msra.mxu0 0.0
    %278 = vmatprep.subr.mxu0 0.0
    %279 = vmatpush1.msra.mxu0 0.0
    %280 = vmatprep.subr.mxu0 0.0
    %281 = vmatpush1.msra.mxu0 0.0
    %282 = vmatprep.subr.mxu0 0.0
    %283 = vmatpush1.msra.mxu0 0.0
    %284 = vmatprep.subr.mxu0 0.0
    %285 = vmatpush1.msra.mxu0 0.0
    %286 = vmatprep.subr.mxu0 0.0
    %287 = vmatpush1.msra.mxu0 0.0
    %288 = vmatprep.subr.mxu0 0.0
    %289 = vmatpush1.msra.mxu0 0.0
    %290 = vmatprep.subr.mxu0 0.0
    %291 = vmatpush1.msra.mxu0 0.0
    %292 = vmatprep.subr.mxu0 0.0
    %293 = vmatpush1.msra.mxu0 0.0
    %294 = vmatprep.subr.mxu0 0.0
    %295 = vmatpush1.msra.mxu0 0.0
    %296 = vmatprep.subr.mxu0 0.0
    %297 = vmatpush1.msra.mxu0 0.0
    %298 = vmatprep.subr.mxu0 0.0
    %299 = vmatpush1.msra.mxu0 0.0
    %300 = vmatprep.subr.mxu0 0.0
    %301 = vmatpush1.msra.mxu0 0.0
    %302 = vmatprep.subr.mxu0 0.0
    %303 = vmatpush1.msra.mxu0 0.0
    %304 = vmatprep.subr.mxu0 0.0
    %305 = vmatpush1.msra.mxu0 0.0
    %306 = vmatprep.subr.mxu0 0.0
    %307 = vmatpush1.msra.mxu0 0.0
    %308 = vmatprep.mubr.f32.mxu0 0.0
    %309 = vmatmul.mubr.f32.gmra.mrb[0].mxu0 %v239
    %v310 = vpop.f32.mrb[0].mxu0
    %v311 = vadd.f32 %v236, %v310
    %v312 = vpop.f32.mrb[0].mxu0
    %313 = vmatprep.mubr.f32.mxu0 0.0
    %314 = vmatmul.mubr.f32.gmra.mrb[0].mxu0 %v242
    %v315 = vpop.f32.mrb[0].mxu0
    %v316 = vadd.f32 %v236, %v315
    %v317 = vpop.f32.mrb[0].mxu0
    %318 = vdwg.mxu0
    %v319 = vtanh.pop %v311
    %v320 = vtanh.pop %v316
    %321 = vst.msk [vmem:[#allocation2] sm:$0xff] %vm40, %v319
    %322 = vst.msk [vmem:[#allocation2 + $0x8] sm:$0xff] %vm40, %v320
    // Predicated region
    $region30: #{sequential_forward.1} parent=1 // pred_check
      _
    $region31: #{sequential_forward.1} parent=1 // pred_check_branch
      %324 = sbr.rel (0) target = $region33
    $region32: #{sequential_forward.1} parent=1 // pred_region
      %s326 = ssub.s32 256, 256
      %327 = vsyncadd [#allocation3], %s326
      %s328 = sshll.u32 [#allocation2], 4
      %s329 = int_to_ptr.vmem [resolvable:$true] %s328
      %334 = dma.vmem_to_hbm [thread:$0]  %s329, 256, %s7, [#allocation3], 128, 128, 8
    $region33: #{sequential_forward.1} parent=1 // pred_fallthru
      _
    // Predicated region
    $region34: #{sequential_forward.1} parent=1 // pred_check
      _
    $region35: #{sequential_forward.1} parent=1 // pred_check_branch
      %336 = sbr.rel (0) target = $region37
    $region36: #{sequential_forward.1} parent=1 // pred_region
      %337 = dma.done [#allocation3], 256
    $region37: #{sequential_forward.1} parent=1 // pred_fallthru
      _
    %338 = vsyncpa [#allocation3], 1

</llo_original>
